<compile_context>
chip_gen: v7x
topology: tpu7x:2x2x1
jax: 0.10.0
libtpu: 0.0.40
codegen_flags: <defaults>
</compile_context>

<pallas_src>
import functools

import jax
import jax.numpy as jnp
from jax import lax
from jax.experimental import pallas as pl
from jax.experimental.pallas import tpu as pltpu


def _round_up(x, m):
    return ((x + m - 1) // m) * m


def _variance_head_kernel(x_ref, w_ref, b_ref, mu_ref, lv_ref, *, precision):
    """One (batch, HW-tile) block.

    x_ref:  (1, C_in, hw_tile)   activations, NCHW-native (H*W in lanes)
    w_ref:  (2*C_out, C_in)      fused [W_mu ; W_lv]   (VMEM-resident)
    b_ref:  (2*C_out, 1)         fused [b_mu ; b_lv]   (VMEM-resident, f32)
    mu_ref: (1, C_out, hw_tile)
    lv_ref: (1, C_out, hw_tile)
    """
    x = x_ref[0]                                            # (C_in, hw_tile)
    y = jnp.dot(w_ref[...], x,
                preferred_element_type=jnp.float32,
                precision=precision)                        # (2*C_out, hw_tile) f32
    y = y + b_ref[...]                                      # bias column broadcasts over lanes

    c_out = mu_ref.shape[1]
    mu_ref[0] = y[:c_out].astype(mu_ref.dtype)              # mu half: plain affine

    # Softplus-style epilogue only on the log_var sublane rows (halves EUP work).
    lv = jnp.clip(y[c_out:], -7.0, 7.0)                     # torch.clamp(log_var, -7, 7)
    lv = jnp.log(1.0 + jnp.exp(lv)) + 1e-6                  # exact torch form: log(1+exp)
    lv_ref[0] = lv.astype(lv_ref.dtype)


def conv2d_variance_head(x, w_mu, b_mu, w_lv, b_lv, *,
                         compute_dtype=jnp.float32,
                         out_dtype=jnp.float32,
                         precision=lax.Precision.DEFAULT,
                         max_hw_tile=None):
    """1x1-conv variance head (NCHW-native Pallas kernel).

    x:    (B, C_in, H, W)         NCHW, like the PyTorch module
    w_*:  (C_out, C_in, 1, 1)     torch.nn.Conv2d weight layout
    b_*:  (C_out,)
    compute_dtype: dtype of MXU inputs (bf16 allowed on all TPU generations;
                   accumulation and the epilogue stay f32 in-kernel).
    out_dtype:     output dtype (f32 default; bf16 halves writeback bytes).
    Returns (mu, log_var), each (B, C_out, H, W).
    """
    B, C_in, H, W = x.shape
    C_out = w_mu.shape[0]
    assert w_mu.shape == (C_out, C_in, 1, 1) and w_lv.shape == (C_out, C_in, 1, 1)
    assert b_mu.shape == (C_out,) and b_lv.shape == (C_out,)

    HW = H * W
    n2 = 2 * C_out

    # NCHW-native: keep H*W flattened in the lane dimension; no transposes.
    x3 = x.reshape(B, C_in, HW)

    # Fused heads: y = [W_mu ; W_lv] @ x  ->  W_fused (2*C_out, C_in), bias column (2*C_out, 1).
    w_fused = jnp.concatenate([w_mu.reshape(C_out, C_in),
                               w_lv.reshape(C_out, C_in)], axis=0)
    b_fused = jnp.concatenate([b_mu, b_lv]).reshape(n2, 1).astype(jnp.float32)

    if compute_dtype != jnp.float32:
        # bf16 MXU inputs halve activation/weight HBM reads on every generation
        # (including v5e); accumulate + clamp/exp/log epilogue remain f32.
        x3 = x3.astype(compute_dtype)
        w_fused = w_fused.astype(compute_dtype)

    in_itemsize = jnp.dtype(x3.dtype).itemsize
    out_itemsize = jnp.dtype(out_dtype).itemsize

    # ---- HW tile: largest lane-dense (multiple of 128) tile under a VMEM budget
    # sized against v7x's 64 MiB physical VMEM (weights/bias buffered + headroom).
    w_bytes = w_fused.size * w_fused.dtype.itemsize
    b_bytes = n2 * 128 * 4                                   # bias pads to 128 lanes in VMEM
    act_budget = max(1 << 20, (40 << 20) - 2 * (w_bytes + b_bytes)) // 2   # per buffer
    bytes_per_col = C_in * in_itemsize + 2 * C_out * out_itemsize
    hw_cap = max(128, (act_budget // bytes_per_col) // 128 * 128)
    if max_hw_tile is not None:
        hw_cap = min(hw_cap, _round_up(max_hw_tile, 128))
    hw_tile = min(_round_up(HW, 128), hw_cap)
    hw_pad = _round_up(HW, hw_tile)
    if hw_pad != HW:
        x3 = jnp.pad(x3, ((0, 0), (0, 0), (0, hw_pad - HW)))  # padded lanes discarded below

    grid = (B, hw_pad // hw_tile)

    vmem_needed = 2 * hw_tile * bytes_per_col + 2 * (w_bytes + b_bytes) + (4 << 20)
    vmem_limit = int(min(48 << 20, max(32 << 20, vmem_needed)))   # stays under v7x physical

    cost = pl.CostEstimate(
        flops=2 * B * hw_pad * C_in * n2,
        transcendentals=2 * B * hw_pad * C_out,              # exp + log on the lv half only
        bytes_accessed=(x3.size * in_itemsize + w_bytes + n2 * 4
                        + 2 * B * hw_pad * C_out * out_itemsize),
    )

    kernel = functools.partial(_variance_head_kernel, precision=precision)

    mu3, lv3 = pl.pallas_call(
        kernel,
        out_shape=(jax.ShapeDtypeStruct((B, C_out, hw_pad), out_dtype),
                   jax.ShapeDtypeStruct((B, C_out, hw_pad), out_dtype)),
        grid=grid,
        in_specs=[
            pl.BlockSpec((1, C_in, hw_tile), lambda b, j: (b, 0, j)),   # streamed activations
            pl.BlockSpec((n2, C_in), lambda b, j: (0, 0)),              # fused weights (resident)
            pl.BlockSpec((n2, 1), lambda b, j: (0, 0)),                 # fused bias   (resident)
        ],
        out_specs=(
            pl.BlockSpec((1, C_out, hw_tile), lambda b, j: (b, 0, j)),  # mu, lane-dense
            pl.BlockSpec((1, C_out, hw_tile), lambda b, j: (b, 0, j)),  # log_var, lane-dense
        ),
        compiler_params=pltpu.CompilerParams(
            dimension_semantics=("parallel", "parallel"),               # dual-TC on v7x
            vmem_limit_bytes=vmem_limit),
        cost_estimate=cost,
    )(x3, w_fused, b_fused)

    if hw_pad != HW:
        mu3 = mu3[:, :, :HW]
        lv3 = lv3[:, :, :HW]
    mu = mu3.reshape(B, C_out, H, W)
    log_var = lv3.reshape(B, C_out, H, W)
    return mu, log_var


def _reference(x, w_mu, b_mu, w_lv, b_lv):
    """Pure-JAX reference matching the PyTorch forward."""
    w_mu2 = w_mu.reshape(w_mu.shape[0], w_mu.shape[1])
    w_lv2 = w_lv.reshape(w_lv.shape[0], w_lv.shape[1])
    hp = lax.Precision.HIGHEST
    mu = jnp.einsum("bchw,oc->bohw", x, w_mu2, precision=hp) + b_mu[None, :, None, None]
    lv = jnp.einsum("bchw,oc->bohw", x, w_lv2, precision=hp) + b_lv[None, :, None, None]
    lv = jnp.clip(lv, -7.0, 7.0)
    lv = jnp.log(1.0 + jnp.exp(lv)) + 1e-6
    return mu, lv


if __name__ == "__main__":
    B, C_in, C_out, H, W = 2, 4, 8, 16, 16

    key = jax.random.PRNGKey(0)
    kx, kwm, kbm, kwl, kbl = jax.random.split(key, 5)

    # Deterministic torch-like Conv2d init: U(-1/sqrt(fan_in), 1/sqrt(fan_in)).
    bound = 1.0 / (C_in ** 0.5)
    x = jax.random.normal(kx, (B, C_in, H, W), dtype=jnp.float32)
    w_mu = jax.random.uniform(kwm, (C_out, C_in, 1, 1), jnp.float32, -bound, bound)
    b_mu = jax.random.uniform(kbm, (C_out,), jnp.float32, -bound, bound)
    w_lv = jax.random.uniform(kwl, (C_out, C_in, 1, 1), jnp.float32, -bound, bound)
    b_lv = jax.random.uniform(kbl, (C_out,), jnp.float32, -bound, bound)

    mu_ref, lv_ref = _reference(x, w_mu, b_mu, w_lv, b_lv)

    # (1) Exact-semantics check: f32 inputs, HIGHEST MXU precision (opt-in),
    #     max_hw_tile=128 forces grid=(2, 2) to exercise HW-tile pipelining.
    mu, log_var = conv2d_variance_head(
        x, w_mu, b_mu, w_lv, b_lv,
        precision=lax.Precision.HIGHEST, max_hw_tile=128)
    jax.block_until_ready((mu, log_var))
    assert mu.shape == (B, C_out, H, W) and log_var.shape == (B, C_out, H, W)
    assert jnp.allclose(mu, mu_ref, atol=1e-5, rtol=1e-5)
    assert jnp.allclose(log_var, lv_ref, atol=1e-5, rtol=1e-5)
    assert bool(jnp.all(log_var > 0.0))

    # (2) Fast path: default MXU precision (no 3-6x bf16 decomposition).
    mu_d, lv_d = conv2d_variance_head(x, w_mu, b_mu, w_lv, b_lv)
    jax.block_until_ready((mu_d, lv_d))
    assert jnp.allclose(mu_d, mu_ref, atol=5e-2, rtol=5e-2)
    assert jnp.allclose(lv_d, lv_ref, atol=5e-2, rtol=5e-2)
    assert bool(jnp.all(lv_d > 0.0))

    # (3) bf16 MXU-input path (valid on v5e/v6e/v7x): compare against a
    #     reference fed the same bf16-rounded activations/weights
    #     (biases + epilogue stay f32 in both).
    mu_bf, lv_bf = conv2d_variance_head(
        x, w_mu, b_mu, w_lv, b_lv, compute_dtype=jnp.bfloat16, max_hw_tile=128)
    jax.block_until_ready((mu_bf, lv_bf))
    xr = x.astype(jnp.bfloat16).astype(jnp.float32)
    wmr = w_mu.astype(jnp.bfloat16).astype(jnp.float32)
    wlr = w_lv.astype(jnp.bfloat16).astype(jnp.float32)
    mu_rbf, lv_rbf = _reference(xr, wmr, b_mu, wlr, b_lv)
    assert jnp.allclose(mu_bf, mu_rbf, atol=5e-3, rtol=5e-3)
    assert jnp.allclose(lv_bf, lv_rbf, atol=5e-3, rtol=5e-3)

    print("KERNEL_OK")
</pallas_src>

<mosaic_0001>
module attributes {stable_mosaic.version = 11 : i64} {
  func.func @_variance_head_kernel(%arg0: i32, %arg1: i32, %arg2: memref<1x4x128xf32, #tpu.memory_space<vmem>>, %arg3: memref<16x4xf32, #tpu.memory_space<vmem>>, %arg4: memref<16x1xf32, #tpu.memory_space<vmem>>, %arg5: memref<1x8x128xf32, #tpu.memory_space<vmem>>, %arg6: memref<1x8x128xf32, #tpu.memory_space<vmem>>) attributes {dimension_semantics = [#tpu.dimension_semantics<parallel>, #tpu.dimension_semantics<parallel>], iteration_bounds = array<i64: 2, 2>, scalar_prefetch = 0 : i64, scratch_operands = 0 : i64, tpu.core_type = #tpu.core_type<tc>, window_params = [{transform_indices = @transform_0, window_bounds = array<i64: 1, 4, 128>}, {pipeline_mode = #tpu.pipeline_mode<synchronous>, transform_indices = @transform_1, window_bounds = array<i64: 16, 4>}, {pipeline_mode = #tpu.pipeline_mode<synchronous>, transform_indices = @transform_2, window_bounds = array<i64: 16, 1>}, {transform_indices = @transform_3, window_bounds = array<i64: 1, 8, 128>}, {transform_indices = @transform_4, window_bounds = array<i64: 1, 8, 128>}]} {
    %c0 = arith.constant 0 : index
    %c0_0 = arith.constant 0 : index
    %c0_1 = arith.constant 0 : index
    %0 = vector.load %arg2[%c0, %c0_0, %c0_1] : memref<1x4x128xf32, #tpu.memory_space<vmem>>, vector<1x4x128xf32>
    %1 = vector.shape_cast %0 : vector<1x4x128xf32> to vector<4x128xf32>
    %c0_2 = arith.constant 0 : index
    %c0_3 = arith.constant 0 : index
    %2 = vector.load %arg3[%c0_2, %c0_3] : memref<16x4xf32, #tpu.memory_space<vmem>>, vector<16x4xf32>
    %cst = arith.constant dense<0.000000e+00> : vector<16x128xf32>
    %3 = tpu.matmul %2, %1, %cst {dimension_numbers = #tpu.dot_dimension_numbers<[1], [0], [0], [1], [0, 0, 1, 1], [], []>, precision = #tpu.contract_precision<fp32>} : vector<16x4xf32>, vector<4x128xf32>, vector<16x128xf32> -> vector<16x128xf32>
    %c0_4 = arith.constant 0 : index
    %c0_5 = arith.constant 0 : index
    %4 = vector.load %arg4[%c0_4, %c0_5] : memref<16x1xf32, #tpu.memory_space<vmem>>, vector<16x1xf32>
    %5 = vector.broadcast %4 : vector<16x1xf32> to vector<16x128xf32>
    %6 = arith.addf %3, %5 : vector<16x128xf32>
    %7 = vector.extract_strided_slice %6 {offsets = [0, 0], sizes = [8, 128], strides = [1, 1]} : vector<16x128xf32> to vector<8x128xf32>
    %c0_6 = arith.constant 0 : index
    %c0_7 = arith.constant 0 : index
    %c0_8 = arith.constant 0 : index
    %8 = vector.load %arg5[%c0_6, %c0_7, %c0_8] : memref<1x8x128xf32, #tpu.memory_space<vmem>>, vector<1x8x128xf32>
    %9 = vector.shape_cast %8 : vector<1x8x128xf32> to vector<8x128xf32>
    %10 = vector.shape_cast %7 : vector<8x128xf32> to vector<1x8x128xf32>
    tpu.vector_store %arg5[%c0_6, %c0_7, %c0_8], %10 {strides = array<i32>} : memref<1x8x128xf32, #tpu.memory_space<vmem>>, vector<1x8x128xf32>,
    %11 = vector.extract_strided_slice %6 {offsets = [8, 0], sizes = [8, 128], strides = [1, 1]} : vector<16x128xf32> to vector<8x128xf32>
    %cst_9 = arith.constant -7.000000e+00 : f32
    %cst_10 = arith.constant 7.000000e+00 : f32
    %12 = vector.broadcast %cst_9 : f32 to vector<8x128xf32>
    %13 = arith.maximumf %12, %11 : vector<8x128xf32>
    %14 = vector.broadcast %cst_10 : f32 to vector<8x128xf32>
    %15 = arith.minimumf %14, %13 : vector<8x128xf32>
    %16 = math.exp %15 : vector<8x128xf32>
    %cst_11 = arith.constant 1.000000e+00 : f32
    %17 = vector.broadcast %cst_11 : f32 to vector<8x128xf32>
    %18 = arith.addf %17, %16 : vector<8x128xf32>
    %19 = math.log %18 : vector<8x128xf32>
    %cst_12 = arith.constant 9.99999997E-7 : f32
    %20 = vector.broadcast %cst_12 : f32 to vector<8x128xf32>
    %21 = arith.addf %19, %20 : vector<8x128xf32>
    %c0_13 = arith.constant 0 : index
    %c0_14 = arith.constant 0 : index
    %c0_15 = arith.constant 0 : index
    %22 = vector.load %arg6[%c0_13, %c0_14, %c0_15] : memref<1x8x128xf32, #tpu.memory_space<vmem>>, vector<1x8x128xf32>
    %23 = vector.shape_cast %22 : vector<1x8x128xf32> to vector<8x128xf32>
    %24 = vector.shape_cast %21 : vector<8x128xf32> to vector<1x8x128xf32>
    tpu.vector_store %arg6[%c0_13, %c0_14, %c0_15], %24 {strides = array<i32>} : memref<1x8x128xf32, #tpu.memory_space<vmem>>, vector<1x8x128xf32>,
    return
  }
  func.func @transform_0(%arg0: i32, %arg1: i32) -> (i32, i32, i32) {
    %c0_i32 = arith.constant 0 : i32
    %c0_i32_0 = arith.constant 0 : i32
    return %arg0, %c0_i32, %arg1 : i32, i32, i32
  }
  func.func @transform_1(%arg0: i32, %arg1: i32) -> (i32, i32) {
    %c0_i32 = arith.constant 0 : i32
    %c0_i32_0 = arith.constant 0 : i32
    %c0_i32_1 = arith.constant 0 : i32
    return %c0_i32, %c0_i32_0 : i32, i32
  }
  func.func @transform_2(%arg0: i32, %arg1: i32) -> (i32, i32) {
    %c0_i32 = arith.constant 0 : i32
    %c0_i32_0 = arith.constant 0 : i32
    %c0_i32_1 = arith.constant 0 : i32
    return %c0_i32, %c0_i32_0 : i32, i32
  }
  func.func @transform_3(%arg0: i32, %arg1: i32) -> (i32, i32, i32) {
    %c0_i32 = arith.constant 0 : i32
    %c0_i32_0 = arith.constant 0 : i32
    return %arg0, %c0_i32, %arg1 : i32, i32, i32
  }
  func.func @transform_4(%arg0: i32, %arg1: i32) -> (i32, i32, i32) {
    %c0_i32 = arith.constant 0 : i32
    %c0_i32_0 = arith.constant 0 : i32
    return %arg0, %c0_i32, %arg1 : i32, i32, i32
  }
}

</mosaic_0001>

<llo_original>
// kernel: tpu_custom_call.1
$region0: #{tpu_custom_call.1}
  #allocation0 [shape = 'u32[]', space=smem, size = 0x4, offset = 0x4, fixed_abs, tag = 'smem constant byte address 0x4 - core index']
  #allocation1 [shape = 'u32[144,128]{1,0:T(1,128)}', space=vmem, size = 0x12000, scoped, tag = 'internal scratch']
  %s0 = inlined_call_operand.vmem [shape: f32[2,4,256], index: 0, kind: input, shape index: {}]
  %s1 = inlined_call_operand.vmem [shape: f32[16,4], index: 1, kind: input, shape index: {}]
  %s2 = inlined_call_operand.vmem [shape: f32[16,1], index: 2, kind: input, shape index: {}]
  %s3 = inlined_call_operand.hbm [shape: f32[2,8,256], index: 3, kind: output, shape index: {0}]
  %s4 = inlined_call_operand.hbm [shape: f32[2,8,256], index: 4, kind: output, shape index: {1}]
  %5 = xla_tuple %s3, %s4
  %s6 = sld [smem:[#allocation0]]
  $region53: #{tpu_custom_call.1} parent=0
    _
  %s8 = ssub.s32 1, %s6
  %s9 = scalar_select 0, %s8, %s6
  $region1: #{tpu_custom_call.1} parent=0
    #allocation2 [shape = 'u8[8192]{0}', space=vmem, size = 0x2000, scoped, tag = 'output window, operand 0']
    #allocation3 [shape = 's32[2]{0}', space=sflag, size = 0x8, scoped, tag = 'scoped memory for tpu_custom_call.1']
    #allocation4 [shape = 'u8[8192]{0}', space=vmem, size = 0x2000, scoped, tag = 'output window, operand 1']
    #allocation5 [shape = 's32[2]{0}', space=sflag, size = 0x8, scoped, tag = 'scoped memory for tpu_custom_call.1']
    %10 = vsyncpa [#allocation3], 0
    %s11 = scalar_lea.sflag [#allocation3], 1
    %12 = vsyncpa %s11, 0
    %13 = vsyncpa [#allocation5], 0
    %s14 = scalar_lea.sflag [#allocation5], 1
    %15 = vsyncpa %s14, 0
    loop: start=0, step=1, limit=6
    $region2: #{tpu_custom_call.1} parent=1 // loop_pre_header
      _
    $region3: #{tpu_custom_call.1} parent=1 // loop_header
      %s17 = sphi 0, %s21
      %p18 = scmp.ge.s32.totalorder %s17, 6
      %s24 = sphi 0, %s36
      %s25 = sphi 0, %s32
      %s26 = sphi 0, %s24
      %s27 = sphi 0, %s25
      %s28 = sphi 0, %s26
      %s29 = sphi 0, %s27
      %s41 = sphi 0, %s43
      %s44 = sphi 0, %s41
      %s45 = sphi 0, %s44
      %s61 = sphi 0, %s45
      %s65 = sphi 0, %s65
      %s67 = sphi 0, %s65
      %s68 = sphi 0, %s67
      %s82 = sphi 0, %s68
      %s86 = sphi 0, %s86
      %s88 = sphi 0, %s86
      %s89 = sphi 0, %s88
      %s103 = sphi 0, %s89
      %s111 = sphi 0, %s113
      %s114 = sphi 0, %s111
      %s115 = sphi 0, %s114
      %s131 = sphi 0, %s115
      %s139 = sphi 0, %s141
      %s142 = sphi 0, %s139
      %s143 = sphi 0, %s142
      %s159 = sphi 0, %s143
    $region4: #{tpu_custom_call.1} parent=1 // loop_header_branch
      %20 = sbr.rel (%p18) target = $region8
    $region5: #{tpu_custom_call.1} parent=1 // loop_body
      %s22 = ssub.s32 %s17, 1
      %s23 = ssub.s32 %s17, 2
      %s30 = sadd.s32 1, %s25
      %p31 = scmp.ge.s32.totalorder %s30, 2
      %s32 = scalar_select %p31, 0, %s30
      %s33 = sadd.s32 1, %s24
      %s34 = scalar_select %p31, %s33, %s24
      %p35 = scmp.ge.s32.totalorder %s34, 2
      %s36 = scalar_select %p35, 0, %s34
      %s37 = ssub.s32 %s24, %s36
      %s38 = ssub.s32 %s25, %s32
      %s39 = sor.u32 %s37, %s38
      %p40 = scmp.eq.s32.totalorder %s39, 0
      %s42 = sadd.s32 %s41, 1
      %s43 = scalar_select %p40, %s41, %s42
      %p46 = pneg %p40
      %p47 = scmp.eq.s32.totalorder %s17, 3
      %p48 = por %p46, %p47
      %p49 = scmp.ne.s32.totalorder %s41, %s44
      %p50 = scmp.eq.s32.totalorder %s17, 0
      %p51 = por %p49, %p50
      %p52 = scmp.ne.s32.totalorder %s41, %s44
      %p53 = scmp.eq.s32.totalorder %s22, 3
      %p54 = por %p52, %p53
      %p55 = scmp.ne.s32.totalorder %s44, %s45
      %p56 = scmp.eq.s32.totalorder %s22, 0
      %p57 = por %p55, %p56
      %p58 = scmp.ne.s32.totalorder %s44, %s45
      %p59 = scmp.eq.s32.totalorder %s23, 3
      %p60 = por %p58, %p59
      %p62 = scmp.ne.s32.totalorder %s45, %s61
      %p63 = scmp.eq.s32.totalorder %s23, 0
      %p64 = por %p62, %p63
      %s66 = sadd.s32 %s65, 1
      %p69 = scmp.eq.s32.totalorder %s17, 3
      %p70 = scmp.ne.s32.totalorder %s65, %s67
      %p71 = scmp.eq.s32.totalorder %s17, 0
      %p72 = por %p70, %p71
      %p73 = scmp.ne.s32.totalorder %s65, %s67
      %p74 = scmp.eq.s32.totalorder %s22, 3
      %p75 = por %p73, %p74
      %p76 = scmp.ne.s32.totalorder %s67, %s68
      %p77 = scmp.eq.s32.totalorder %s22, 0
      %p78 = por %p76, %p77
      %p79 = scmp.ne.s32.totalorder %s67, %s68
      %p80 = scmp.eq.s32.totalorder %s23, 3
      %p81 = por %p79, %p80
      %p83 = scmp.ne.s32.totalorder %s68, %s82
      %p84 = scmp.eq.s32.totalorder %s23, 0
      %p85 = por %p83, %p84
      %s87 = sadd.s32 %s86, 1
      %p90 = scmp.eq.s32.totalorder %s17, 3
      %p91 = scmp.ne.s32.totalorder %s86, %s88
      %p92 = scmp.eq.s32.totalorder %s17, 0
      %p93 = por %p91, %p92
      %p94 = scmp.ne.s32.totalorder %s86, %s88
      %p95 = scmp.eq.s32.totalorder %s22, 3
      %p96 = por %p94, %p95
      %p97 = scmp.ne.s32.totalorder %s88, %s89
      %p98 = scmp.eq.s32.totalorder %s22, 0
      %p99 = por %p97, %p98
      %p100 = scmp.ne.s32.totalorder %s88, %s89
      %p101 = scmp.eq.s32.totalorder %s23, 3
      %p102 = por %p100, %p101
      %p104 = scmp.ne.s32.totalorder %s89, %s103
      %p105 = scmp.eq.s32.totalorder %s23, 0
      %p106 = por %p104, %p105
      %s107 = ssub.s32 %s24, %s36
      %s108 = ssub.s32 %s25, %s32
      %s109 = sor.u32 %s107, %s108
      %p110 = scmp.eq.s32.totalorder %s109, 0
      %s112 = sadd.s32 %s111, 1
      %s113 = scalar_select %p110, %s111, %s112
      %p116 = pneg %p110
      %p117 = scmp.eq.s32.totalorder %s17, 3
      %p118 = por %p116, %p117
      %p119 = scmp.ne.s32.totalorder %s111, %s114
      %p120 = scmp.eq.s32.totalorder %s17, 0
      %p121 = por %p119, %p120
      %p122 = scmp.ne.s32.totalorder %s111, %s114
      %p123 = scmp.eq.s32.totalorder %s22, 3
      %p124 = por %p122, %p123
      %p125 = scmp.ne.s32.totalorder %s114, %s115
      %p126 = scmp.eq.s32.totalorder %s22, 0
      %p127 = por %p125, %p126
      %p128 = scmp.ne.s32.totalorder %s114, %s115
      %p129 = scmp.eq.s32.totalorder %s23, 3
      %p130 = por %p128, %p129
      %p132 = scmp.ne.s32.totalorder %s115, %s131
      %p133 = scmp.eq.s32.totalorder %s23, 0
      %p134 = por %p132, %p133
      %s135 = ssub.s32 %s24, %s36
      %s136 = ssub.s32 %s25, %s32
      %s137 = sor.u32 %s135, %s136
      %p138 = scmp.eq.s32.totalorder %s137, 0
      %s140 = sadd.s32 %s139, 1
      %s141 = scalar_select %p138, %s139, %s140
      %p144 = pneg %p138
      %p145 = scmp.eq.s32.totalorder %s17, 3
      %p146 = por %p144, %p145
      %p147 = scmp.ne.s32.totalorder %s139, %s142
      %p148 = scmp.eq.s32.totalorder %s17, 0
      %p149 = por %p147, %p148
      %p150 = scmp.ne.s32.totalorder %s139, %s142
      %p151 = scmp.eq.s32.totalorder %s22, 3
      %p152 = por %p150, %p151
      %p153 = scmp.ne.s32.totalorder %s142, %s143
      %p154 = scmp.eq.s32.totalorder %s22, 0
      %p155 = por %p153, %p154
      %p156 = scmp.ne.s32.totalorder %s142, %s143
      %p157 = scmp.eq.s32.totalorder %s23, 3
      %p158 = por %p156, %p157
      %p160 = scmp.ne.s32.totalorder %s143, %s159
      %p161 = scmp.eq.s32.totalorder %s23, 0
      %p162 = por %p160, %p161
      %p163 = scmp.le.s32.totalorder 1, %s17
      %p164 = scmp.lt.s32.totalorder %s17, 5
      %p165 = pnand %p163, %p164
      %p166 = pneg %p165
      // Predicated region
      $region9: #{tpu_custom_call.1} parent=5 // pred_check
        _
      $region10: #{tpu_custom_call.1} parent=5 // pred_check_branch
        %168 = sbr.rel (%p165) target = $region12
      $region11: #{tpu_custom_call.1} parent=5 // pred_region
        %s169 = ssub.s32 %s17, 1
        // Predicated region
        $region13: #{tpu_custom_call.1} parent=11 // pred_check
          %p170 = pneg %p78
        $region14: #{tpu_custom_call.1} parent=11 // pred_check_branch
          %172 = sbr.rel (%p170) target = $region16
        $region15: #{tpu_custom_call.1} parent=11 // pred_region
          _
        $region16: #{tpu_custom_call.1} parent=11 // pred_fallthru
          _
        // Predicated region
        $region17: #{tpu_custom_call.1} parent=11 // pred_check
          %p173 = pneg %p99
        $region18: #{tpu_custom_call.1} parent=11 // pred_check_branch
          %175 = sbr.rel (%p173) target = $region20
        $region19: #{tpu_custom_call.1} parent=11 // pred_region
          _
        $region20: #{tpu_custom_call.1} parent=11 // pred_fallthru
          _
      $region12: #{tpu_custom_call.1} parent=5 // pred_fallthru
        _
      %p176 = scmp.lt.s32.totalorder %s17, 4
      // Predicated region
      $region21: #{tpu_custom_call.1} parent=5 // pred_check
        %p177 = pneg %p176
      $region22: #{tpu_custom_call.1} parent=5 // pred_check_branch
        %179 = sbr.rel (%p177) target = $region24
      $region23: #{tpu_custom_call.1} parent=5 // pred_region
        // Predicated region
        $region25: #{tpu_custom_call.1} parent=23 // pred_check
          %p180 = pneg %p51
        $region26: #{tpu_custom_call.1} parent=23 // pred_check_branch
          %182 = sbr.rel (%p180) target = $region28
        $region27: #{tpu_custom_call.1} parent=23 // pred_region
          %p183 = scmp.lt.s32.totalorder %s24, 1
          %s184 = scalar_select %p183, %s24, 1
          %p185 = scmp.lt.s32.totalorder %s25, 1
          %s186 = scalar_select %p185, %s25, 1
          %s187 = smul.addr %s184, 2
          %s188 = sadd.s32 %s186, %s187
          %s189 = smul.addr %s188, 4
          %s190 = scalar_lea.vmem %s0, %s189
        $region28: #{tpu_custom_call.1} parent=23 // pred_fallthru
          _
      $region24: #{tpu_custom_call.1} parent=5 // pred_fallthru
        _
      %p191 = scmp.le.s32.totalorder 1, %s17
      %p192 = scmp.lt.s32.totalorder %s17, 5
      %p193 = pnand %p191, %p192
      %p194 = pneg %p193
      // Predicated region
      $region29: #{tpu_custom_call.1} parent=5 // pred_check
        _
      $region30: #{tpu_custom_call.1} parent=5 // pred_check_branch
        %196 = sbr.rel (%p193) target = $region32
      $region31: #{tpu_custom_call.1} parent=5 // pred_region
        %s197 = ssub.s32 %s17, 1
        %p198 = scmp.lt.s32.totalorder %s26, 1
        %s199 = scalar_select %p198, %s26, 1
        %p200 = scmp.lt.s32.totalorder %s27, 1
        %s201 = scalar_select %p200, %s27, 1
        %s202 = smul.addr %s199, 2
        %s203 = sadd.s32 %s201, %s202
        %s204 = smul.addr %s203, 4
        %s205 = scalar_lea.vmem %s0, %s204
        %p206 = pneg %p57
        %p207 = pneg %p54
        %p208 = pneg %p78
        %p209 = pneg %p75
        %p210 = pneg %p99
        %p211 = pneg %p96
        %p212 = pneg %p127
        %p213 = pneg %p124
        %s214 = sand.u32 %s114, 1
        %s215 = scalar_lea.sflag [#allocation3], %s214
        %s216 = sand.u32 %s114, 1
        %s217 = smul.addr %s216, 8
        %s218 = scalar_lea.vmem [#allocation2], %s217
        %p219 = pneg %p155
        %p220 = pneg %p152
        %s221 = sand.u32 %s142, 1
        %s222 = scalar_lea.sflag [#allocation5], %s221
        %s223 = sand.u32 %s142, 1
        %s224 = smul.addr %s223, 8
        %s225 = scalar_lea.vmem [#allocation4], %s224
        %p226 = scmp.lt.s32.totalorder %s26, 1
        %s227 = scalar_select %p226, %s26, 1
        %p228 = scmp.lt.s32.totalorder %s27, 1
        %s229 = scalar_select %p228, %s27, 1
        %s230 = smul.addr %s227, 2
        %s231 = sadd.s32 %s229, %s230
        %s232 = smul.addr %s231, 4
        %s233 = scalar_lea.vmem %s0, %s232
        %v234 = vld [vmem:[%s233] sm:$0xf]
        %v235 = vld [vmem:[%s1] sm:$0xff]
        %v236 = vld [vmem:[%s1 + $0x8] sm:$0xff]
        %v237 = vld [vmem:[%s2] sm:$0xff]
        %v238 = vld [vmem:[%s2 + $0x8] sm:$0xff]
        %240 = vset.pattern.permute.xlu0 0
        %241 = vperm.xlu0 %240, %v237
        %v242 = vpop.permute.xlu0 %241
        %245 = vset.pattern.permute.xlu0 0
        %246 = vperm.xlu0 %245, %v238
        %v247 = vpop.permute.xlu0 %246
        %vm249 = vcmask 31744
        %v251 = vsel %vm249, %v235, 0
        %v254 = vsel %vm249, %v236, 0
        %vm256 = vcmask 1043456
        %v258 = vsel %vm256, %v234, 0
        %260 = vmatprep.subr.mxu0 0.0
        %v261 = vand.u32 %v258, 4294901760
        %262 = vmatpush1.msra.mxu0 %v261
        %263 = vmatprep.subr.mxu0 0.0
        %264 = vmatpush1.msra.mxu0 0.0
        %265 = vmatprep.subr.mxu0 0.0
        %266 = vmatpush1.msra.mxu0 0.0
        %267 = vmatprep.subr.mxu0 0.0
        %268 = vmatpush1.msra.mxu0 0.0
        %269 = vmatprep.subr.mxu0 0.0
        %270 = vmatpush1.msra.mxu0 0.0
        %271 = vmatprep.subr.mxu0 0.0
        %272 = vmatpush1.msra.mxu0 0.0
        %273 = vmatprep.subr.mxu0 0.0
        %274 = vmatpush1.msra.mxu0 0.0
        %275 = vmatprep.subr.mxu0 0.0
        %276 = vmatpush1.msra.mxu0 0.0
        %277 = vmatprep.subr.mxu0 0.0
        %278 = vmatpush1.msra.mxu0 0.0
        %279 = vmatprep.subr.mxu0 0.0
        %280 = vmatpush1.msra.mxu0 0.0
        %281 = vmatprep.subr.mxu0 0.0
        %282 = vmatpush1.msra.mxu0 0.0
        %283 = vmatprep.subr.mxu0 0.0
        %284 = vmatpush1.msra.mxu0 0.0
        %285 = vmatprep.subr.mxu0 0.0
        %286 = vmatpush1.msra.mxu0 0.0
        %287 = vmatprep.subr.mxu0 0.0
        %288 = vmatpush1.msra.mxu0 0.0
        %289 = vmatprep.subr.mxu0 0.0
        %290 = vmatpush1.msra.mxu0 0.0
        %291 = vmatprep.subr.mxu0 0.0
        %292 = vmatpush1.msra.mxu0 0.0
        %293 = vmatprep.subr.mxu0 0.0
        %294 = vmatpush1.msra.mxu0 0.0
        %295 = vmatprep.subr.mxu0 0.0
        %296 = vmatpush1.msra.mxu0 0.0
        %297 = vmatprep.subr.mxu0 0.0
        %298 = vmatpush1.msra.mxu0 0.0
        %299 = vmatprep.subr.mxu0 0.0
        %300 = vmatpush1.msra.mxu0 0.0
        %301 = vmatprep.subr.mxu0 0.0
        %302 = vmatpush1.msra.mxu0 0.0
        %303 = vmatprep.subr.mxu0 0.0
        %304 = vmatpush1.msra.mxu0 0.0
        %305 = vmatprep.subr.mxu0 0.0
        %306 = vmatpush1.msra.mxu0 0.0
        %307 = vmatprep.subr.mxu0 0.0
        %308 = vmatpush1.msra.mxu0 0.0
        %309 = vmatprep.subr.mxu0 0.0
        %310 = vmatpush1.msra.mxu0 0.0
        %311 = vmatprep.subr.mxu0 0.0
        %312 = vmatpush1.msra.mxu0 0.0
        %313 = vmatprep.subr.mxu0 0.0
        %314 = vmatpush1.msra.mxu0 0.0
        %315 = vmatprep.subr.mxu0 0.0
        %316 = vmatpush1.msra.mxu0 0.0
        %317 = vmatprep.subr.mxu0 0.0
        %318 = vmatpush1.msra.mxu0 0.0
        %319 = vmatprep.subr.mxu0 0.0
        %320 = vmatpush1.msra.mxu0 0.0
        %321 = vmatprep.subr.mxu0 0.0
        %322 = vmatpush1.msra.mxu0 0.0
        %323 = vmatprep.subr.mxu0 0.0
        %324 = vmatpush1.msra.mxu0 0.0
        %325 = vmatprep.mubr.f32.mxu0 0.0
        %v326 = vand.u32 %v251, 4294901760
        %v327 = vsub.f32 %v251, %v326
        %v328 = vand.u32 %v327, 4294901760
        %v329 = vsub.f32 %v327, %v328
        %v330 = vand.u32 %v329, 4294901760
        %331 = vmatmul.mubr.f32.gmra.mrb[0].mxu0 %v330
        %v332 = vpop.f32.mrb[0].mxu0
        %v333 = vadd.f32 %v242, %v332
        %v334 = vpop.f32.mrb[0].mxu0
        %335 = vmatprep.mubr.f32.mxu0 0.0
        %v336 = vand.u32 %v254, 4294901760
        %v337 = vsub.f32 %v254, %v336
        %v338 = vand.u32 %v337, 4294901760
        %v339 = vsub.f32 %v337, %v338
        %v340 = vand.u32 %v339, 4294901760
        %341 = vmatmul.mubr.f32.gmra.mrb[0].mxu0 %v340
        %v342 = vpop.f32.mrb[0].mxu0
        %v343 = vadd.f32 %v247, %v342
        %v344 = vpop.f32.mrb[0].mxu0
        %345 = vdwg.mxu0
        %346 = vmatprep.subr.mxu0 0.0
        %v347 = vand.u32 %v258, 4294901760
        %v348 = vsub.f32 %v258, %v347
        %v349 = vand.u32 %v348, 4294901760
        %v350 = vsub.f32 %v348, %v349
        %v351 = vand.u32 %v350, 4294901760
        %352 = vmatpush1.msra.mxu0 %v351
        %353 = vmatprep.subr.mxu0 0.0
        %354 = vmatpush1.msra.mxu0 0.0
        %355 = vmatprep.subr.mxu0 0.0
        %356 = vmatpush1.msra.mxu0 0.0
        %357 = vmatprep.subr.mxu0 0.0
        %358 = vmatpush1.msra.mxu0 0.0
        %359 = vmatprep.subr.mxu0 0.0
        %360 = vmatpush1.msra.mxu0 0.0
        %361 = vmatprep.subr.mxu0 0.0
        %362 = vmatpush1.msra.mxu0 0.0
        %363 = vmatprep.subr.mxu0 0.0
        %364 = vmatpush1.msra.mxu0 0.0
        %365 = vmatprep.subr.mxu0 0.0
        %366 = vmatpush1.msra.mxu0 0.0
        %367 = vmatprep.subr.mxu0 0.0
        %368 = vmatpush1.msra.mxu0 0.0
        %369 = vmatprep.subr.mxu0 0.0
        %370 = vmatpush1.msra.mxu0 0.0
        %371 = vmatprep.subr.mxu0 0.0
        %372 = vmatpush1.msra.mxu0 0.0
        %373 = vmatprep.subr.mxu0 0.0
        %374 = vmatpush1.msra.mxu0 0.0
        %375 = vmatprep.subr.mxu0 0.0
        %376 = vmatpush1.msra.mxu0 0.0
        %377 = vmatprep.subr.mxu0 0.0
        %378 = vmatpush1.msra.mxu0 0.0
        %379 = vmatprep.subr.mxu0 0.0
        %380 = vmatpush1.msra.mxu0 0.0
        %381 = vmatprep.subr.mxu0 0.0
        %382 = vmatpush1.msra.mxu0 0.0
        %383 = vmatprep.subr.mxu0 0.0
        %384 = vmatpush1.msra.mxu0 0.0
        %385 = vmatprep.subr.mxu0 0.0
        %386 = vmatpush1.msra.mxu0 0.0
        %387 = vmatprep.subr.mxu0 0.0
        %388 = vmatpush1.msra.mxu0 0.0
        %389 = vmatprep.subr.mxu0 0.0
        %390 = vmatpush1.msra.mxu0 0.0
        %391 = vmatprep.subr.mxu0 0.0
        %392 = vmatpush1.msra.mxu0 0.0
        %393 = vmatprep.subr.mxu0 0.0
        %394 = vmatpush1.msra.mxu0 0.0
        %395 = vmatprep.subr.mxu0 0.0
        %396 = vmatpush1.msra.mxu0 0.0
        %397 = vmatprep.subr.mxu0 0.0
        %398 = vmatpush1.msra.mxu0 0.0
        %399 = vmatprep.subr.mxu0 0.0
        %400 = vmatpush1.msra.mxu0 0.0
        %401 = vmatprep.subr.mxu0 0.0
        %402 = vmatpush1.msra.mxu0 0.0
        %403 = vmatprep.subr.mxu0 0.0
        %404 = vmatpush1.msra.mxu0 0.0
        %405 = vmatprep.subr.mxu0 0.0
        %406 = vmatpush1.msra.mxu0 0.0
        %407 = vmatprep.subr.mxu0 0.0
        %408 = vmatpush1.msra.mxu0 0.0
        %409 = vmatprep.subr.mxu0 0.0
        %410 = vmatpush1.msra.mxu0 0.0
        %411 = vmatprep.subr.mxu0 0.0
        %412 = vmatpush1.msra.mxu0 0.0
        %413 = vmatprep.subr.mxu0 0.0
        %414 = vmatpush1.msra.mxu0 0.0
        %415 = vmatprep.mubr.f32.mxu0 0.0
        %v416 = vand.u32 %v251, 4294901760
        %417 = vmatmul.mubr.f32.gmra.mrb[0].mxu0 %v416
        %v418 = vpop.f32.mrb[0].mxu0
        %v419 = vadd.f32 %v333, %v418
        %v420 = vpop.f32.mrb[0].mxu0
        %421 = vmatprep.mubr.f32.mxu0 0.0
        %v422 = vand.u32 %v254, 4294901760
        %423 = vmatmul.mubr.f32.gmra.mrb[0].mxu0 %v422
        %v424 = vpop.f32.mrb[0].mxu0
        %v425 = vadd.f32 %v343, %v424
        %v426 = vpop.f32.mrb[0].mxu0
        %427 = vdwg.mxu0
        %428 = vmatprep.subr.mxu0 0.0
        %v429 = vand.u32 %v258, 4294901760
        %v430 = vsub.f32 %v258, %v429
        %431 = vmatpush1.msra.mxu0 %v430
        %432 = vmatprep.subr.mxu0 0.0
        %433 = vmatpush1.msra.mxu0 0.0
        %434 = vmatprep.subr.mxu0 0.0
        %435 = vmatpush1.msra.mxu0 0.0
        %436 = vmatprep.subr.mxu0 0.0
        %437 = vmatpush1.msra.mxu0 0.0
        %438 = vmatprep.subr.mxu0 0.0
        %439 = vmatpush1.msra.mxu0 0.0
        %440 = vmatprep.subr.mxu0 0.0
        %441 = vmatpush1.msra.mxu0 0.0
        %442 = vmatprep.subr.mxu0 0.0
        %443 = vmatpush1.msra.mxu0 0.0
        %444 = vmatprep.subr.mxu0 0.0
        %445 = vmatpush1.msra.mxu0 0.0
        %446 = vmatprep.subr.mxu0 0.0
        %447 = vmatpush1.msra.mxu0 0.0
        %448 = vmatprep.subr.mxu0 0.0
        %449 = vmatpush1.msra.mxu0 0.0
        %450 = vmatprep.subr.mxu0 0.0
        %451 = vmatpush1.msra.mxu0 0.0
        %452 = vmatprep.subr.mxu0 0.0
        %453 = vmatpush1.msra.mxu0 0.0
        %454 = vmatprep.subr.mxu0 0.0
        %455 = vmatpush1.msra.mxu0 0.0
        %456 = vmatprep.subr.mxu0 0.0
        %457 = vmatpush1.msra.mxu0 0.0
        %458 = vmatprep.subr.mxu0 0.0
        %459 = vmatpush1.msra.mxu0 0.0
        %460 = vmatprep.subr.mxu0 0.0
        %461 = vmatpush1.msra.mxu0 0.0
        %462 = vmatprep.subr.mxu0 0.0
        %463 = vmatpush1.msra.mxu0 0.0
        %464 = vmatprep.subr.mxu0 0.0
        %465 = vmatpush1.msra.mxu0 0.0
        %466 = vmatprep.subr.mxu0 0.0
        %467 = vmatpush1.msra.mxu0 0.0
        %468 = vmatprep.subr.mxu0 0.0
        %469 = vmatpush1.msra.mxu0 0.0
        %470 = vmatprep.subr.mxu0 0.0
        %471 = vmatpush1.msra.mxu0 0.0
        %472 = vmatprep.subr.mxu0 0.0
        %473 = vmatpush1.msra.mxu0 0.0
        %474 = vmatprep.subr.mxu0 0.0
        %475 = vmatpush1.msra.mxu0 0.0
        %476 = vmatprep.subr.mxu0 0.0
        %477 = vmatpush1.msra.mxu0 0.0
        %478 = vmatprep.subr.mxu0 0.0
        %479 = vmatpush1.msra.mxu0 0.0
        %480 = vmatprep.subr.mxu0 0.0
        %481 = vmatpush1.msra.mxu0 0.0
        %482 = vmatprep.subr.mxu0 0.0
        %483 = vmatpush1.msra.mxu0 0.0
        %484 = vmatprep.subr.mxu0 0.0
        %485 = vmatpush1.msra.mxu0 0.0
        %486 = vmatprep.subr.mxu0 0.0
        %487 = vmatpush1.msra.mxu0 0.0
        %488 = vmatprep.subr.mxu0 0.0
        %489 = vmatpush1.msra.mxu0 0.0
        %490 = vmatprep.subr.mxu0 0.0
        %491 = vmatpush1.msra.mxu0 0.0
        %492 = vmatprep.subr.mxu0 0.0
        %493 = vmatpush1.msra.mxu0 0.0
        %494 = vmatprep.mubr.f32.mxu0 0.0
        %v495 = vand.u32 %v251, 4294901760
        %v496 = vsub.f32 %v251, %v495
        %497 = vmatmul.mubr.f32.gmra.mrb[0].mxu0 %v496
        %v498 = vpop.f32.mrb[0].mxu0
        %v499 = vadd.f32 %v419, %v498
        %v500 = vpop.f32.mrb[0].mxu0
        %501 = vmatprep.mubr.f32.mxu0 0.0
        %v502 = vand.u32 %v254, 4294901760
        %v503 = vsub.f32 %v254, %v502
        %504 = vmatmul.mubr.f32.gmra.mrb[0].mxu0 %v503
        %v505 = vpop.f32.mrb[0].mxu0
        %v506 = vadd.f32 %v425, %v505
        %v507 = vpop.f32.mrb[0].mxu0
        %508 = vdwg.mxu0
        %509 = vmatprep.subr.mxu0 0.0
        %v510 = vand.u32 %v258, 4294901760
        %511 = vmatpush1.msra.mxu0 %v510
        %512 = vmatprep.subr.mxu0 0.0
        %513 = vmatpush1.msra.mxu0 0.0
        %514 = vmatprep.subr.mxu0 0.0
        %515 = vmatpush1.msra.mxu0 0.0
        %516 = vmatprep.subr.mxu0 0.0
        %517 = vmatpush1.msra.mxu0 0.0
        %518 = vmatprep.subr.mxu0 0.0
        %519 = vmatpush1.msra.mxu0 0.0
        %520 = vmatprep.subr.mxu0 0.0
        %521 = vmatpush1.msra.mxu0 0.0
        %522 = vmatprep.subr.mxu0 0.0
        %523 = vmatpush1.msra.mxu0 0.0
        %524 = vmatprep.subr.mxu0 0.0
        %525 = vmatpush1.msra.mxu0 0.0
        %526 = vmatprep.subr.mxu0 0.0
        %527 = vmatpush1.msra.mxu0 0.0
        %528 = vmatprep.subr.mxu0 0.0
        %529 = vmatpush1.msra.mxu0 0.0
        %530 = vmatprep.subr.mxu0 0.0
        %531 = vmatpush1.msra.mxu0 0.0
        %532 = vmatprep.subr.mxu0 0.0
        %533 = vmatpush1.msra.mxu0 0.0
        %534 = vmatprep.subr.mxu0 0.0
        %535 = vmatpush1.msra.mxu0 0.0
        %536 = vmatprep.subr.mxu0 0.0
        %537 = vmatpush1.msra.mxu0 0.0
        %538 = vmatprep.subr.mxu0 0.0
        %539 = vmatpush1.msra.mxu0 0.0
        %540 = vmatprep.subr.mxu0 0.0
        %541 = vmatpush1.msra.mxu0 0.0
        %542 = vmatprep.subr.mxu0 0.0
        %543 = vmatpush1.msra.mxu0 0.0
        %544 = vmatprep.subr.mxu0 0.0
        %545 = vmatpush1.msra.mxu0 0.0
        %546 = vmatprep.subr.mxu0 0.0
        %547 = vmatpush1.msra.mxu0 0.0
        %548 = vmatprep.subr.mxu0 0.0
        %549 = vmatpush1.msra.mxu0 0.0
        %550 = vmatprep.subr.mxu0 0.0
        %551 = vmatpush1.msra.mxu0 0.0
        %552 = vmatprep.subr.mxu0 0.0
        %553 = vmatpush1.msra.mxu0 0.0
        %554 = vmatprep.subr.mxu0 0.0
        %555 = vmatpush1.msra.mxu0 0.0
        %556 = vmatprep.subr.mxu0 0.0
        %557 = vmatpush1.msra.mxu0 0.0
        %558 = vmatprep.subr.mxu0 0.0
        %559 = vmatpush1.msra.mxu0 0.0
        %560 = vmatprep.subr.mxu0 0.0
        %561 = vmatpush1.msra.mxu0 0.0
        %562 = vmatprep.subr.mxu0 0.0
        %563 = vmatpush1.msra.mxu0 0.0
        %564 = vmatprep.subr.mxu0 0.0
        %565 = vmatpush1.msra.mxu0 0.0
        %566 = vmatprep.subr.mxu0 0.0
        %567 = vmatpush1.msra.mxu0 0.0
        %568 = vmatprep.subr.mxu0 0.0
        %569 = vmatpush1.msra.mxu0 0.0
        %570 = vmatprep.subr.mxu0 0.0
        %571 = vmatpush1.msra.mxu0 0.0
        %572 = vmatprep.subr.mxu0 0.0
        %573 = vmatpush1.msra.mxu0 0.0
        %574 = vmatprep.mubr.f32.mxu0 0.0
        %v575 = vand.u32 %v251, 4294901760
        %v576 = vsub.f32 %v251, %v575
        %v577 = vand.u32 %v576, 4294901760
        %578 = vmatmul.mubr.f32.gmra.mrb[0].mxu0 %v577
        %v579 = vpop.f32.mrb[0].mxu0
        %v580 = vadd.f32 %v499, %v579
        %v581 = vpop.f32.mrb[0].mxu0
        %582 = vmatprep.mubr.f32.mxu0 0.0
        %v583 = vand.u32 %v254, 4294901760
        %v584 = vsub.f32 %v254, %v583
        %v585 = vand.u32 %v584, 4294901760
        %586 = vmatmul.mubr.f32.gmra.mrb[0].mxu0 %v585
        %v587 = vpop.f32.mrb[0].mxu0
        %v588 = vadd.f32 %v506, %v587
        %v589 = vpop.f32.mrb[0].mxu0
        %590 = vdwg.mxu0
        %591 = vmatprep.subr.mxu0 0.0
        %v592 = vand.u32 %v258, 4294901760
        %v593 = vsub.f32 %v258, %v592
        %v594 = vand.u32 %v593, 4294901760
        %595 = vmatpush1.msra.mxu0 %v594
        %596 = vmatprep.subr.mxu0 0.0
        %597 = vmatpush1.msra.mxu0 0.0
        %598 = vmatprep.subr.mxu0 0.0
        %599 = vmatpush1.msra.mxu0 0.0
        %600 = vmatprep.subr.mxu0 0.0
        %601 = vmatpush1.msra.mxu0 0.0
        %602 = vmatprep.subr.mxu0 0.0
        %603 = vmatpush1.msra.mxu0 0.0
        %604 = vmatprep.subr.mxu0 0.0
        %605 = vmatpush1.msra.mxu0 0.0
        %606 = vmatprep.subr.mxu0 0.0
        %607 = vmatpush1.msra.mxu0 0.0
        %608 = vmatprep.subr.mxu0 0.0
        %609 = vmatpush1.msra.mxu0 0.0
        %610 = vmatprep.subr.mxu0 0.0
        %611 = vmatpush1.msra.mxu0 0.0
        %612 = vmatprep.subr.mxu0 0.0
        %613 = vmatpush1.msra.mxu0 0.0
        %614 = vmatprep.subr.mxu0 0.0
        %615 = vmatpush1.msra.mxu0 0.0
        %616 = vmatprep.subr.mxu0 0.0
        %617 = vmatpush1.msra.mxu0 0.0
        %618 = vmatprep.subr.mxu0 0.0
        %619 = vmatpush1.msra.mxu0 0.0
        %620 = vmatprep.subr.mxu0 0.0
        %621 = vmatpush1.msra.mxu0 0.0
        %622 = vmatprep.subr.mxu0 0.0
        %623 = vmatpush1.msra.mxu0 0.0
        %624 = vmatprep.subr.mxu0 0.0
        %625 = vmatpush1.msra.mxu0 0.0
        %626 = vmatprep.subr.mxu0 0.0
        %627 = vmatpush1.msra.mxu0 0.0
        %628 = vmatprep.subr.mxu0 0.0
        %629 = vmatpush1.msra.mxu0 0.0
        %630 = vmatprep.subr.mxu0 0.0
        %631 = vmatpush1.msra.mxu0 0.0
        %632 = vmatprep.subr.mxu0 0.0
        %633 = vmatpush1.msra.mxu0 0.0
        %634 = vmatprep.subr.mxu0 0.0
        %635 = vmatpush1.msra.mxu0 0.0
        %636 = vmatprep.subr.mxu0 0.0
        %637 = vmatpush1.msra.mxu0 0.0
        %638 = vmatprep.subr.mxu0 0.0
        %639 = vmatpush1.msra.mxu0 0.0
        %640 = vmatprep.subr.mxu0 0.0
        %641 = vmatpush1.msra.mxu0 0.0
        %642 = vmatprep.subr.mxu0 0.0
        %643 = vmatpush1.msra.mxu0 0.0
        %644 = vmatprep.subr.mxu0 0.0
        %645 = vmatpush1.msra.mxu0 0.0
        %646 = vmatprep.subr.mxu0 0.0
        %647 = vmatpush1.msra.mxu0 0.0
        %648 = vmatprep.subr.mxu0 0.0
        %649 = vmatpush1.msra.mxu0 0.0
        %650 = vmatprep.subr.mxu0 0.0
        %651 = vmatpush1.msra.mxu0 0.0
        %652 = vmatprep.subr.mxu0 0.0
        %653 = vmatpush1.msra.mxu0 0.0
        %654 = vmatprep.subr.mxu0 0.0
        %655 = vmatpush1.msra.mxu0 0.0
        %656 = vmatprep.subr.mxu0 0.0
        %657 = vmatpush1.msra.mxu0 0.0
        %658 = vmatprep.mubr.f32.mxu0 0.0
        %v659 = vand.u32 %v251, 4294901760
        %660 = vmatmul.mubr.f32.gmra.mrb[0].mxu0 %v659
        %v661 = vpop.f32.mrb[0].mxu0
        %v662 = vadd.f32 %v580, %v661
        %v663 = vpop.f32.mrb[0].mxu0
        %664 = vmatprep.mubr.f32.mxu0 0.0
        %v665 = vand.u32 %v254, 4294901760
        %666 = vmatmul.mubr.f32.gmra.mrb[0].mxu0 %v665
        %v667 = vpop.f32.mrb[0].mxu0
        %v668 = vadd.f32 %v588, %v667
        %v669 = vpop.f32.mrb[0].mxu0
        %670 = vdwg.mxu0
        %671 = vmatprep.subr.mxu0 0.0
        %v672 = vand.u32 %v258, 4294901760
        %673 = vmatpush1.msra.mxu0 %v672
        %674 = vmatprep.subr.mxu0 0.0
        %675 = vmatpush1.msra.mxu0 0.0
        %676 = vmatprep.subr.mxu0 0.0
        %677 = vmatpush1.msra.mxu0 0.0
        %678 = vmatprep.subr.mxu0 0.0
        %679 = vmatpush1.msra.mxu0 0.0
        %680 = vmatprep.subr.mxu0 0.0
        %681 = vmatpush1.msra.mxu0 0.0
        %682 = vmatprep.subr.mxu0 0.0
        %683 = vmatpush1.msra.mxu0 0.0
        %684 = vmatprep.subr.mxu0 0.0
        %685 = vmatpush1.msra.mxu0 0.0
        %686 = vmatprep.subr.mxu0 0.0
        %687 = vmatpush1.msra.mxu0 0.0
        %688 = vmatprep.subr.mxu0 0.0
        %689 = vmatpush1.msra.mxu0 0.0
        %690 = vmatprep.subr.mxu0 0.0
        %691 = vmatpush1.msra.mxu0 0.0
        %692 = vmatprep.subr.mxu0 0.0
        %693 = vmatpush1.msra.mxu0 0.0
        %694 = vmatprep.subr.mxu0 0.0
        %695 = vmatpush1.msra.mxu0 0.0
        %696 = vmatprep.subr.mxu0 0.0
        %697 = vmatpush1.msra.mxu0 0.0
        %698 = vmatprep.subr.mxu0 0.0
        %699 = vmatpush1.msra.mxu0 0.0
        %700 = vmatprep.subr.mxu0 0.0
        %701 = vmatpush1.msra.mxu0 0.0
        %702 = vmatprep.subr.mxu0 0.0
        %703 = vmatpush1.msra.mxu0 0.0
        %704 = vmatprep.subr.mxu0 0.0
        %705 = vmatpush1.msra.mxu0 0.0
        %706 = vmatprep.subr.mxu0 0.0
        %707 = vmatpush1.msra.mxu0 0.0
        %708 = vmatprep.subr.mxu0 0.0
        %709 = vmatpush1.msra.mxu0 0.0
        %710 = vmatprep.subr.mxu0 0.0
        %711 = vmatpush1.msra.mxu0 0.0
        %712 = vmatprep.subr.mxu0 0.0
        %713 = vmatpush1.msra.mxu0 0.0
        %714 = vmatprep.subr.mxu0 0.0
        %715 = vmatpush1.msra.mxu0 0.0
        %716 = vmatprep.subr.mxu0 0.0
        %717 = vmatpush1.msra.mxu0 0.0
        %718 = vmatprep.subr.mxu0 0.0
        %719 = vmatpush1.msra.mxu0 0.0
        %720 = vmatprep.subr.mxu0 0.0
        %721 = vmatpush1.msra.mxu0 0.0
        %722 = vmatprep.subr.mxu0 0.0
        %723 = vmatpush1.msra.mxu0 0.0
        %724 = vmatprep.subr.mxu0 0.0
        %725 = vmatpush1.msra.mxu0 0.0
        %726 = vmatprep.subr.mxu0 0.0
        %727 = vmatpush1.msra.mxu0 0.0
        %728 = vmatprep.subr.mxu0 0.0
        %729 = vmatpush1.msra.mxu0 0.0
        %730 = vmatprep.subr.mxu0 0.0
        %731 = vmatpush1.msra.mxu0 0.0
        %732 = vmatprep.subr.mxu0 0.0
        %733 = vmatpush1.msra.mxu0 0.0
        %734 = vmatprep.subr.mxu0 0.0
        %735 = vmatpush1.msra.mxu0 0.0
        %736 = vmatprep.mubr.f32.mxu0 0.0
        %v737 = vand.u32 %v251, 4294901760
        %738 = vmatmul.mubr.f32.gmra.mrb[0].mxu0 %v737
        %v739 = vpop.f32.mrb[0].mxu0
        %v740 = vadd.f32 %v662, %v739
        %v741 = vpop.f32.mrb[0].mxu0
        %742 = vmatprep.mubr.f32.mxu0 0.0
        %v743 = vand.u32 %v254, 4294901760
        %744 = vmatmul.mubr.f32.gmra.mrb[0].mxu0 %v743
        %v745 = vpop.f32.mrb[0].mxu0
        %v746 = vadd.f32 %v668, %v745
        %v747 = vpop.f32.mrb[0].mxu0
        %748 = vdwg.mxu0
        %749 = vst [vmem:[%s218] sm:$0xff] %v740
        %v750 = vmax.f32 %v746, -7.0
        %v751 = vmin.f32 %v750, 7.0
        %v752 = vmul.f32 %v751, 1.442695
        %v753 = vpow.pop %v752
        %v754 = vadd.f32 %v753, 1.0
        %v755 = vlog2.pop %v754
        %v756 = vmul.f32 %v755, 0.6931472
        %v757 = vadd.f32 %v756, 1e-06
        %758 = vst [vmem:[%s225] sm:$0xff] %v757
        %s759 = sand.u32 %s114, 1
        %s760 = scalar_lea.sflag [#allocation3], %s759
        %s761 = sand.u32 %s114, 1
        %s762 = smul.addr %s761, 8
        %s763 = scalar_lea.vmem [#allocation2], %s762
        %s764 = sand.u32 %s142, 1
        %s765 = scalar_lea.sflag [#allocation5], %s764
        %s766 = sand.u32 %s142, 1
        %s767 = smul.addr %s766, 8
        %s768 = scalar_lea.vmem [#allocation4], %s767
        // Predicated region
        $region33: #{tpu_custom_call.1} parent=31 // pred_check
          %p769 = pneg %p124
        $region34: #{tpu_custom_call.1} parent=31 // pred_check_branch
          %771 = sbr.rel (%p769) target = $region36
        $region35: #{tpu_custom_call.1} parent=31 // pred_region
          %s773 = ssub.s32 128, 128
          %774 = vsyncadd %s760, %s773
          %s775 = smul.addr %s26, 2
          %s776 = sadd.s32 %s27, %s775
          %s777 = smul.addr %s776, 128
          %s778 = scalar_lea.hbm %s3, %s777
          %s780 = sshll.u32 %s763, 4
          %s781 = int_to_ptr.vmem [resolvable:$true] %s780
          %783 = dma.vmem_to_hbm [thread:$0]  %s781, 128, %s778, %s760
        $region36: #{tpu_custom_call.1} parent=31 // pred_fallthru
          _
        // Predicated region
        $region37: #{tpu_custom_call.1} parent=31 // pred_check
          %p784 = pneg %p152
        $region38: #{tpu_custom_call.1} parent=31 // pred_check_branch
          %786 = sbr.rel (%p784) target = $region40
        $region39: #{tpu_custom_call.1} parent=31 // pred_region
          %s788 = ssub.s32 128, 128
          %789 = vsyncadd %s765, %s788
          %s790 = smul.addr %s26, 2
          %s791 = sadd.s32 %s27, %s790
          %s792 = smul.addr %s791, 128
          %s793 = scalar_lea.hbm %s4, %s792
          %s795 = sshll.u32 %s768, 4
          %s796 = int_to_ptr.vmem [resolvable:$true] %s795
          %798 = dma.vmem_to_hbm [thread:$0]  %s796, 128, %s793, %s765
        $region40: #{tpu_custom_call.1} parent=31 // pred_fallthru
          _
      $region32: #{tpu_custom_call.1} parent=5 // pred_fallthru
        _
      %p799 = scmp.le.s32.totalorder 2, %s17
      // Predicated region
      $region41: #{tpu_custom_call.1} parent=5 // pred_check
        %p800 = pneg %p799
      $region42: #{tpu_custom_call.1} parent=5 // pred_check_branch
        %802 = sbr.rel (%p800) target = $region44
      $region43: #{tpu_custom_call.1} parent=5 // pred_region
        %s803 = ssub.s32 %s17, 2
        // Predicated region
        $region45: #{tpu_custom_call.1} parent=43 // pred_check
          %p804 = pneg %p130
        $region46: #{tpu_custom_call.1} parent=43 // pred_check_branch
          %806 = sbr.rel (%p804) target = $region48
        $region47: #{tpu_custom_call.1} parent=43 // pred_region
          %s807 = sand.u32 %s115, 1
          %s808 = scalar_lea.sflag [#allocation3], %s807
          %s809 = sand.u32 %s115, 1
          %s810 = smul.addr %s809, 8
          %s811 = scalar_lea.vmem [#allocation2], %s810
          %812 = dma.done %s808, 128
        $region48: #{tpu_custom_call.1} parent=43 // pred_fallthru
          _
        // Predicated region
        $region49: #{tpu_custom_call.1} parent=43 // pred_check
          %p813 = pneg %p158
        $region50: #{tpu_custom_call.1} parent=43 // pred_check_branch
          %815 = sbr.rel (%p813) target = $region52
        $region51: #{tpu_custom_call.1} parent=43 // pred_region
          %s816 = sand.u32 %s143, 1
          %s817 = scalar_lea.sflag [#allocation5], %s816
          %s818 = sand.u32 %s143, 1
          %s819 = smul.addr %s818, 8
          %s820 = scalar_lea.vmem [#allocation4], %s819
          %821 = dma.done %s817, 128
        $region52: #{tpu_custom_call.1} parent=43 // pred_fallthru
          _
      $region44: #{tpu_custom_call.1} parent=5 // pred_fallthru
        _
    $region6: #{tpu_custom_call.1} parent=1 // loop_footer
      %s21 = sadd.s32 1, %s17
    $region7: #{tpu_custom_call.1} parent=1 // loop_footer_branch
      %16 = sbr.rel target = $region3
    $region8: #{tpu_custom_call.1} parent=1 // loop_exit
      _
    %822 = vsyncpa [#allocation3], 1
    %s823 = scalar_lea.sflag [#allocation3], 1
    %824 = vsyncpa %s823, 1
    %825 = vsyncpa [#allocation5], 1
    %s826 = scalar_lea.sflag [#allocation5], 1
    %827 = vsyncpa %s826, 1

</llo_original>
